<compile_context>
chip_gen: v5e
topology: v5e:2x2
jax: 0.10.0
libtpu: 0.0.40
codegen_flags: <defaults>
</compile_context>

<pallas_src>
import jax
import jax.numpy as jnp
from jax.experimental import pallas as pl
from jax.experimental.pallas import tpu as pltpu


def _round_up(x, m):
    return (x + m - 1) // m * m


def _gnn_kernel(b_ref, at_ref, hk_ref, hj_ref, wrel_ref, wroot_ref, out_ref, acc_ref):
    # b_ref:     (1, 1)        f32 SMEM   lin_rel bias
    # at_ref:    (TK, TJ)      int8 VMEM  A^T tile, A^T[src, dst] = #edges src->dst
    # hk_ref:    (F, TK)       f32 VMEM   H^T tile of source nodes (k tile)
    # hj_ref:    (F, TJ)       f32 VMEM   H^T tile of destination nodes (j tile)
    # wrel_ref:  (1, F)        f32 VMEM   lin_rel weight (row vector)
    # wroot_ref: (1, F)        f32 VMEM   lin_root weight (row vector)
    # out_ref:   (1, TJ)       f32        lane-dense output row tile
    # acc_ref:   (1, TJ)       f32 VMEM   accumulator scratch
    k = pl.program_id(1)

    @pl.when(k == 0)
    def _init():
        # Root-path term + bias for this destination tile, computed once per j tile.
        acc_ref[...] = (
            jnp.dot(wroot_ref[...], hj_ref[...], preferred_element_type=jnp.float32)
            + b_ref[0, 0]
        )

    # Projected source features for this k tile: s_k[0, m] = h_m . w_rel
    s_k = jnp.dot(wrel_ref[...], hk_ref[...], preferred_element_type=jnp.float32)
    # Aggregate over source nodes: out^T += s_k @ A^T  (int8 counts promoted exactly).
    acc_ref[...] += jnp.dot(s_k, at_ref[...].astype(jnp.float32),
                            preferred_element_type=jnp.float32)

    @pl.when(k == pl.num_programs(1) - 1)
    def _store():
        out_ref[...] = acc_ref[...].astype(out_ref.dtype)


def gnn_forward(x, edges, rot, pos, batch, front_ptr, back_ptr, flat_new_idx,
                w_rel, w_root, b_rel):
    """Pallas implementation of GNN.forward.

    x: [N, f_x], pos: [N, f_p], rot: [N, f_r], edges: [2, E] int32.
    w_rel, w_root: [1, F] (F = f_x + f_p + f_r), b_rel: [1].
    Returns out: [N, 1] float32.
    """
    del batch, front_ptr, back_ptr, flat_new_idx  # stored-only in the torch module

    h = jnp.concatenate([x, pos, rot], axis=-1).astype(jnp.float32)  # [N, F]
    n, f = h.shape

    # Tile size: multiple of 128 lanes, capped at 1024 (A^T int8 double buffers = 2 MiB,
    # well inside default scoped VMEM on v5e/v6e/v7x).
    tile = min(1024, _round_up(n, 128))
    n_pad = _round_up(n, tile)
    nj = n_pad // tile
    nk = n_pad // tile

    # Lane-dense transposed features H^T [F, N_pad] (zero-padded nodes contribute 0).
    h_pad = jnp.zeros((n_pad, f), jnp.float32).at[:n].set(h)
    h_t = h_pad.T

    # Transposed dense adjacency A^T[src, dst] = #edges src->dst, stored as int8
    # (exact for multiplicities <= 127; quarters the HBM bytes of the dominant stream).
    src, dst = edges[0], edges[1]
    adj_t = (jnp.zeros((n_pad, n_pad), jnp.int32)
             .at[src, dst].add(1)
             .astype(jnp.int8))

    wrel_row = w_rel.astype(jnp.float32).reshape(1, f)
    wroot_row = w_root.astype(jnp.float32).reshape(1, f)
    b = b_rel.astype(jnp.float32).reshape(1, 1)

    grid_spec = pltpu.PrefetchScalarGridSpec(
        num_scalar_prefetch=0,
        grid=(nj, nk),
        in_specs=[
            pl.BlockSpec(memory_space=pltpu.MemorySpace.SMEM),    # bias scalar
            pl.BlockSpec((tile, tile), lambda j, k: (k, j)),      # A^T tile
            pl.BlockSpec((f, tile), lambda j, k: (0, k)),         # H^T source (k) tile
            pl.BlockSpec((f, tile), lambda j, k: (0, j)),         # H^T dest   (j) tile
            pl.BlockSpec((1, f), lambda j, k: (0, 0)),            # w_rel
            pl.BlockSpec((1, f), lambda j, k: (0, 0)),            # w_root
        ],
        out_specs=pl.BlockSpec((1, tile), lambda j, k: (0, j)),   # lane-dense row
        scratch_shapes=[pltpu.VMEM((1, tile), jnp.float32)],
    )

    out_t = pl.pallas_call(
        _gnn_kernel,
        out_shape=jax.ShapeDtypeStruct((1, n_pad), jnp.float32),
        grid_spec=grid_spec,
        compiler_params=pltpu.CompilerParams(
            dimension_semantics=("parallel", "arbitrary")),
    )(b, adj_t, h_t, h_t, wrel_row, wroot_row)

    # Layout plumbing back to the module's [N, 1] contract.
    return out_t[0, :n].reshape(n, 1)


if __name__ == "__main__":
    key = jax.random.PRNGKey(0)
    k_x, k_pos, k_rot, k_e, k_wr, k_wn, k_b = jax.random.split(key, 7)

    N = 16          # nodes
    E = 32          # edges
    F_X, F_P, F_R = 9, 3, 4
    SIZE = F_X + F_P + F_R  # 16 -> GraphConv(16, 1)

    x = jax.random.normal(k_x, (N, F_X), jnp.float32)
    pos = jax.random.normal(k_pos, (N, F_P), jnp.float32)
    rot = jax.random.normal(k_rot, (N, F_R), jnp.float32)
    edges = jax.random.randint(k_e, (2, E), 0, N, jnp.int32)

    # Unused-by-compute inputs (the torch module only stores them).
    batch = jnp.zeros((N,), jnp.int32)
    front_ptr = jnp.zeros((2,), jnp.int32)
    back_ptr = jnp.zeros((2,), jnp.int32)
    flat_new_idx = jnp.arange(N, dtype=jnp.int32)

    # Deterministic parameter init (synthetic; shapes match GraphConv(SIZE, 1)):
    #   lin_rel:  weight [1, SIZE] + bias [1]
    #   lin_root: weight [1, SIZE], no bias
    bound = 1.0 / jnp.sqrt(jnp.float32(SIZE))
    w_rel = jax.random.uniform(k_wr, (1, SIZE), jnp.float32, -bound, bound)
    w_root = jax.random.uniform(k_wn, (1, SIZE), jnp.float32, -bound, bound)
    b_rel = jax.random.uniform(k_b, (1,), jnp.float32, -bound, bound)

    out = gnn_forward(x, edges, rot, pos, batch, front_ptr, back_ptr,
                      flat_new_idx, w_rel, w_root, b_rel)
    out = jax.block_until_ready(out)

    # Pure-JAX reference (segment-sum aggregation) for a sanity check.
    h = jnp.concatenate([x, pos, rot], axis=-1)
    agg = jax.ops.segment_sum(h[edges[0]], edges[1], num_segments=N)
    ref = agg @ w_rel.T + h @ w_root.T + b_rel
    assert out.shape == (N, 1)
    assert jnp.allclose(out, ref, atol=1e-3, rtol=1e-3), "mismatch vs reference"

    print("KERNEL_OK")
</pallas_src>

<mosaic_0001>
module attributes {stable_mosaic.version = 11 : i64} {
  func.func @_gnn_kernel(%arg0: i32, %arg1: i32, %arg2: memref<1x1xf32, #tpu.memory_space<smem>>, %arg3: memref<128x128xi8, #tpu.memory_space<vmem>>, %arg4: memref<16x128xf32, #tpu.memory_space<vmem>>, %arg5: memref<16x128xf32, #tpu.memory_space<vmem>>, %arg6: memref<1x16xf32, #tpu.memory_space<vmem>>, %arg7: memref<1x16xf32, #tpu.memory_space<vmem>>, %arg8: memref<1x128xf32, #tpu.memory_space<vmem>>, %arg9: memref<1x128xf32, #tpu.memory_space<vmem>>) attributes {dimension_semantics = [#tpu.dimension_semantics<parallel>, #tpu.dimension_semantics<arbitrary>], iteration_bounds = array<i64: 1, 1>, scalar_prefetch = 0 : i64, scratch_operands = 1 : i64, tpu.core_type = #tpu.core_type<tc>, window_params = [{transform_indices = @transform_0, window_bounds = array<i64: 1, 1>}, {transform_indices = @transform_1, window_bounds = array<i64: 128, 128>}, {transform_indices = @transform_2, window_bounds = array<i64: 16, 128>}, {transform_indices = @transform_3, window_bounds = array<i64: 16, 128>}, {pipeline_mode = #tpu.pipeline_mode<synchronous>, transform_indices = @transform_4, window_bounds = array<i64: 1, 16>}, {pipeline_mode = #tpu.pipeline_mode<synchronous>, transform_indices = @transform_5, window_bounds = array<i64: 1, 16>}, {transform_indices = @transform_6, window_bounds = array<i64: 1, 128>}]} {
    %c0_i32 = arith.constant 0 : i32
    %0 = arith.cmpi eq, %arg1, %c0_i32 : i32
    %1 = arith.extui %0 : i1 to i32
    %c0_i32_0 = arith.constant 0 : i32
    %2 = arith.cmpi ne, %1, %c0_i32_0 : i32
    scf.if %2 {
      %c0_13 = arith.constant 0 : index
      %c0_14 = arith.constant 0 : index
      %15 = vector.load %arg7[%c0_13, %c0_14] : memref<1x16xf32, #tpu.memory_space<vmem>>, vector<1x16xf32>
      %c0_15 = arith.constant 0 : index
      %c0_16 = arith.constant 0 : index
      %16 = vector.load %arg5[%c0_15, %c0_16] : memref<16x128xf32, #tpu.memory_space<vmem>>, vector<16x128xf32>
      %cst_17 = arith.constant dense<0.000000e+00> : vector<1x128xf32>
      %17 = tpu.matmul %15, %16, %cst_17 {dimension_numbers = #tpu.dot_dimension_numbers<[1], [0], [0], [1], [0, 0, 1, 1], [], []>} : vector<1x16xf32>, vector<16x128xf32>, vector<1x128xf32> -> vector<1x128xf32>
      %c0_18 = arith.constant 0 : index
      %c0_19 = arith.constant 0 : index
      %18 = memref.load %arg2[%c0_18, %c0_19] : memref<1x1xf32, #tpu.memory_space<smem>>
      %19 = vector.broadcast %18 : f32 to vector<1x128xf32>
      %20 = arith.addf %17, %19 : vector<1x128xf32>
      %c0_20 = arith.constant 0 : index
      %c0_21 = arith.constant 0 : index
      %21 = vector.load %arg9[%c0_20, %c0_21] : memref<1x128xf32, #tpu.memory_space<vmem>>, vector<1x128xf32>
      tpu.vector_store %arg9[%c0_20, %c0_21], %20 {strides = array<i32>} : memref<1x128xf32, #tpu.memory_space<vmem>>, vector<1x128xf32>,
    } else {
    }
    %c0 = arith.constant 0 : index
    %c0_1 = arith.constant 0 : index
    %3 = vector.load %arg6[%c0, %c0_1] : memref<1x16xf32, #tpu.memory_space<vmem>>, vector<1x16xf32>
    %c0_2 = arith.constant 0 : index
    %c0_3 = arith.constant 0 : index
    %4 = vector.load %arg4[%c0_2, %c0_3] : memref<16x128xf32, #tpu.memory_space<vmem>>, vector<16x128xf32>
    %cst = arith.constant dense<0.000000e+00> : vector<1x128xf32>
    %5 = tpu.matmul %3, %4, %cst {dimension_numbers = #tpu.dot_dimension_numbers<[1], [0], [0], [1], [0, 0, 1, 1], [], []>} : vector<1x16xf32>, vector<16x128xf32>, vector<1x128xf32> -> vector<1x128xf32>
    %c0_4 = arith.constant 0 : index
    %c0_5 = arith.constant 0 : index
    %6 = vector.load %arg9[%c0_4, %c0_5] : memref<1x128xf32, #tpu.memory_space<vmem>>, vector<1x128xf32>
    %c0_6 = arith.constant 0 : index
    %c0_7 = arith.constant 0 : index
    %7 = vector.load %arg3[%c0_6, %c0_7] : memref<128x128xi8, #tpu.memory_space<vmem>>, vector<128x128xi8>
    %8 = arith.sitofp %7 : vector<128x128xi8> to vector<128x128xf32>
    %cst_8 = arith.constant dense<0.000000e+00> : vector<1x128xf32>
    %9 = tpu.matmul %5, %8, %cst_8 {dimension_numbers = #tpu.dot_dimension_numbers<[1], [0], [0], [1], [0, 0, 1, 1], [], []>} : vector<1x128xf32>, vector<128x128xf32>, vector<1x128xf32> -> vector<1x128xf32>
    %10 = arith.addf %6, %9 : vector<1x128xf32>
    %c0_9 = arith.constant 0 : index
    %c0_10 = arith.constant 0 : index
    %11 = vector.load %arg9[%c0_9, %c0_10] : memref<1x128xf32, #tpu.memory_space<vmem>>, vector<1x128xf32>
    tpu.vector_store %arg9[%c0_9, %c0_10], %10 {strides = array<i32>} : memref<1x128xf32, #tpu.memory_space<vmem>>, vector<1x128xf32>,
    %c0_i32_11 = arith.constant 0 : i32
    %12 = arith.cmpi eq, %arg1, %c0_i32_11 : i32
    %13 = arith.extui %12 : i1 to i32
    %c0_i32_12 = arith.constant 0 : i32
    %14 = arith.cmpi ne, %13, %c0_i32_12 : i32
    scf.if %14 {
      %c0_13 = arith.constant 0 : index
      %c0_14 = arith.constant 0 : index
      %15 = vector.load %arg9[%c0_13, %c0_14] : memref<1x128xf32, #tpu.memory_space<vmem>>, vector<1x128xf32>
      %c0_15 = arith.constant 0 : index
      %c0_16 = arith.constant 0 : index
      %16 = vector.load %arg8[%c0_15, %c0_16] : memref<1x128xf32, #tpu.memory_space<vmem>>, vector<1x128xf32>
      tpu.vector_store %arg8[%c0_15, %c0_16], %15 {strides = array<i32>} : memref<1x128xf32, #tpu.memory_space<vmem>>, vector<1x128xf32>,
    } else {
    }
    return
  }
  func.func @transform_0(%arg0: i32, %arg1: i32) -> (i32, i32) {
    %c0_i32 = arith.constant 0 : i32
    %c0_i32_0 = arith.constant 0 : i32
    %c0_i32_1 = arith.constant 0 : i32
    return %c0_i32, %c0_i32_0 : i32, i32
  }
  func.func @transform_1(%arg0: i32, %arg1: i32) -> (i32, i32) {
    %c0_i32 = arith.constant 0 : i32
    return %arg1, %arg0 : i32, i32
  }
  func.func @transform_2(%arg0: i32, %arg1: i32) -> (i32, i32) {
    %c0_i32 = arith.constant 0 : i32
    %c0_i32_0 = arith.constant 0 : i32
    return %c0_i32, %arg1 : i32, i32
  }
  func.func @transform_3(%arg0: i32, %arg1: i32) -> (i32, i32) {
    %c0_i32 = arith.constant 0 : i32
    %c0_i32_0 = arith.constant 0 : i32
    return %c0_i32, %arg0 : i32, i32
  }
  func.func @transform_4(%arg0: i32, %arg1: i32) -> (i32, i32) {
    %c0_i32 = arith.constant 0 : i32
    %c0_i32_0 = arith.constant 0 : i32
    %c0_i32_1 = arith.constant 0 : i32
    return %c0_i32, %c0_i32_0 : i32, i32
  }
  func.func @transform_5(%arg0: i32, %arg1: i32) -> (i32, i32) {
    %c0_i32 = arith.constant 0 : i32
    %c0_i32_0 = arith.constant 0 : i32
    %c0_i32_1 = arith.constant 0 : i32
    return %c0_i32, %c0_i32_0 : i32, i32
  }
  func.func @transform_6(%arg0: i32, %arg1: i32) -> (i32, i32) {
    %c0_i32 = arith.constant 0 : i32
    %c0_i32_0 = arith.constant 0 : i32
    return %c0_i32, %arg0 : i32, i32
  }
}

</mosaic_0001>

<llo_original>
// kernel: tpu_custom_call.1
$region0: #{tpu_custom_call.1}
  #allocation0 [shape = 'u32[]', space=smem, size = 0x4, offset = 0x4, fixed_abs, tag = 'smem constant byte address 0x4 - core index']
  #allocation1 [shape = 'u32[72,128]{1,0:T(1,128)}', space=vmem, size = 0x9000, scoped, tag = 'internal scratch']
  #allocation2 [shape = 'f32[1,128]{1,0:T(1,128)}', space=vmem, size = 0x200, scoped, tag = 'scratch operand']
  #allocation3 [shape = 'f32[1,1]{1,0:T(1,128)S(6)}', space=smem, size = 0x200, scoped, tag = 'scoped memory for tpu_custom_call.1']
  %s0 = inlined_call_operand.<no memory space> [shape: f32[1,1], index: 0, kind: input, shape index: {}]
  %s1 = inlined_call_operand.hbm [shape: s8[128,128], index: 1, kind: input, shape index: {}]
  %s2 = inlined_call_operand.hbm [shape: f32[16,128], index: 2, kind: input, shape index: {}]
  %s3 = inlined_call_operand.hbm [shape: f32[16,128], index: 3, kind: input, shape index: {}]
  %s4 = inlined_call_operand.vmem [shape: f32[1,16], index: 4, kind: input, shape index: {}]
  %s5 = inlined_call_operand.vmem [shape: f32[1,16], index: 5, kind: input, shape index: {}]
  %s6 = inlined_call_operand.hbm [shape: f32[1,128], index: 6, kind: output, shape index: {}]
  %s7 = sld [smem:[#allocation0]]
  $region54: #{tpu_custom_call.1} parent=0
    _
  %s9 = ssub.s32 1, %s7
  %s10 = scalar_select 0, %s9, %s7
  %11 = sst [smem:[#allocation3]] %s0
  $region1: #{tpu_custom_call.1} parent=0
    #allocation4 [shape = 'u8[16384]{0}', space=vmem, size = 0x4000, scoped, tag = 'input window, operand 1, single buffered']
    #allocation5 [shape = 's32[1]{0}', space=sflag, size = 0x4, scoped, tag = 'scoped memory for tpu_custom_call.1']
    #allocation6 [shape = 's32[1]{0}', space=sflag, size = 0x4, scoped, tag = 'scoped memory for tpu_custom_call.1']
    #allocation7 [shape = 'u8[8192]{0}', space=vmem, size = 0x2000, scoped, tag = 'input window, operand 2, single buffered']
    #allocation8 [shape = 's32[1]{0}', space=sflag, size = 0x4, scoped, tag = 'scoped memory for tpu_custom_call.1']
    #allocation9 [shape = 'u8[8192]{0}', space=vmem, size = 0x2000, scoped, tag = 'input window, operand 3, single buffered']
    #allocation10 [shape = 'u8[512]{0}', space=vmem, size = 0x400, scoped, tag = 'output window, operand 0, single buffered']
    %12 = vsyncpa [#allocation5], 0
    %13 = vsyncpa [#allocation8], 0
    %14 = vsyncpa [#allocation6], 0
    // Predicated region
    $region2: #{tpu_custom_call.1} parent=1 // pred_check
      _
    $region3: #{tpu_custom_call.1} parent=1 // pred_check_branch
      %16 = sbr.rel (0) target = $region5
    $region4: #{tpu_custom_call.1} parent=1 // pred_region
      _
    $region5: #{tpu_custom_call.1} parent=1 // pred_fallthru
      _
    // Predicated region
    $region6: #{tpu_custom_call.1} parent=1 // pred_check
      _
    $region7: #{tpu_custom_call.1} parent=1 // pred_check_branch
      %18 = sbr.rel (0) target = $region9
    $region8: #{tpu_custom_call.1} parent=1 // pred_region
      %20 = vsyncadd [#allocation5], 0
      %s21 = sshll.u32 %s1, 4
      %s22 = int_to_ptr.hbm [resolvable:$true] %s21
      %s23 = sshll.u32 [#allocation4], 4
      %s24 = int_to_ptr.vmem [resolvable:$true] %s23
      %29 = dma.hbm_to_vmem [thread:$0]  %s22, 512, %s24, [#allocation5], 128, 128, 8
    $region9: #{tpu_custom_call.1} parent=1 // pred_fallthru
      _
    // Predicated region
    $region10: #{tpu_custom_call.1} parent=1 // pred_check
      _
    $region11: #{tpu_custom_call.1} parent=1 // pred_check_branch
      %31 = sbr.rel (0) target = $region13
    $region12: #{tpu_custom_call.1} parent=1 // pred_region
      %33 = vsyncadd [#allocation8], 0
      %s34 = sshll.u32 %s2, 4
      %s35 = int_to_ptr.hbm [resolvable:$true] %s34
      %s36 = sshll.u32 [#allocation7], 4
      %s37 = int_to_ptr.vmem [resolvable:$true] %s36
      %42 = dma.hbm_to_vmem [thread:$0]  %s35, 256, %s37, [#allocation8], 128, 128, 8
    $region13: #{tpu_custom_call.1} parent=1 // pred_fallthru
      _
    // Predicated region
    $region14: #{tpu_custom_call.1} parent=1 // pred_check
      _
    $region15: #{tpu_custom_call.1} parent=1 // pred_check_branch
      %44 = sbr.rel (0) target = $region17
    $region16: #{tpu_custom_call.1} parent=1 // pred_region
      %46 = vsyncadd [#allocation8], 0
      %s47 = sshll.u32 %s3, 4
      %s48 = int_to_ptr.hbm [resolvable:$true] %s47
      %s49 = sshll.u32 [#allocation9], 4
      %s50 = int_to_ptr.vmem [resolvable:$true] %s49
      %55 = dma.hbm_to_vmem [thread:$0]  %s48, 256, %s50, [#allocation8], 128, 128, 8
    $region17: #{tpu_custom_call.1} parent=1 // pred_fallthru
      _
    // Predicated region
    $region18: #{tpu_custom_call.1} parent=1 // pred_check
      _
    $region19: #{tpu_custom_call.1} parent=1 // pred_check_branch
      %57 = sbr.rel (0) target = $region21
    $region20: #{tpu_custom_call.1} parent=1 // pred_region
      _
    $region21: #{tpu_custom_call.1} parent=1 // pred_fallthru
      _
    // Predicated region
    $region22: #{tpu_custom_call.1} parent=1 // pred_check
      _
    $region23: #{tpu_custom_call.1} parent=1 // pred_check_branch
      %59 = sbr.rel (0) target = $region25
    $region24: #{tpu_custom_call.1} parent=1 // pred_region
      _
    $region25: #{tpu_custom_call.1} parent=1 // pred_fallthru
      _
    // Predicated region
    $region26: #{tpu_custom_call.1} parent=1 // pred_check
      _
    $region27: #{tpu_custom_call.1} parent=1 // pred_check_branch
      %61 = sbr.rel (0) target = $region29
    $region28: #{tpu_custom_call.1} parent=1 // pred_region
      %63 = dma.done [#allocation5], 512
    $region29: #{tpu_custom_call.1} parent=1 // pred_fallthru
      _
    // Predicated region
    $region30: #{tpu_custom_call.1} parent=1 // pred_check
      _
    $region31: #{tpu_custom_call.1} parent=1 // pred_check_branch
      %65 = sbr.rel (0) target = $region33
    $region32: #{tpu_custom_call.1} parent=1 // pred_region
      %67 = dma.done [#allocation8], 256
    $region33: #{tpu_custom_call.1} parent=1 // pred_fallthru
      _
    // Predicated region
    $region34: #{tpu_custom_call.1} parent=1 // pred_check
      _
    $region35: #{tpu_custom_call.1} parent=1 // pred_check_branch
      %69 = sbr.rel (0) target = $region37
    $region36: #{tpu_custom_call.1} parent=1 // pred_region
      %71 = dma.done [#allocation8], 256
    $region37: #{tpu_custom_call.1} parent=1 // pred_fallthru
      _
    %p72 = scmp.eq.s32.totalorder 0, 0
    // Predicated region
    $region38: #{tpu_custom_call.1} parent=1 // pred_check
      %p73 = pneg %p72
    $region39: #{tpu_custom_call.1} parent=1 // pred_check_branch
      %75 = sbr.rel (%p73) target = $region41
    $region40: #{tpu_custom_call.1} parent=1 // pred_region
      %v76 = vld [vmem:[%s5] sm:$0x1]
      %v77 = vld [vmem:[#allocation9] sm:$0xff]
      %v78 = vld [vmem:[#allocation9 + $0x8] sm:$0xff]
      %s79 = sld [smem:[#allocation3]]
      %v80 = vstv %s79
      %vm81 = vcmask 130048
      %v83 = vsel %vm81, %v76, 0
      %85 = vmatpush.msra.mxu0 0.0
      %86 = vmatpush.msra.mxu0 0.0
      %87 = vmatpush.msra.mxu0 0.0
      %88 = vmatpush.msra.mxu0 0.0
      %89 = vmatpush.msra.mxu0 0.0
      %90 = vmatpush.msra.mxu0 0.0
      %91 = vmatpush.msra.mxu0 0.0
      %92 = vmatpush.msra.mxu0 0.0
      %93 = vmatpush.msra.mxu0 0.0
      %94 = vmatpush.msra.mxu0 0.0
      %95 = vmatpush.msra.mxu0 0.0
      %96 = vmatpush.msra.mxu0 0.0
      %97 = vmatpush.msra.mxu0 0.0
      %98 = vmatpush.msra.mxu0 0.0
      %99 = vmatpush.msra.mxu0 %v78
      %100 = vmatpush.msra.mxu0 %v77
      %101 = vmatmul.f32.gmra.mxu0 %v83
      %v102 = vpop.f32.mrf.mxu0
      %v103 = vadd.f32 %v80, %v102
      %104 = vdwg.mxu0
      %105 = vst [vmem:[#allocation2] sm:$0x1] %v103
    $region41: #{tpu_custom_call.1} parent=1 // pred_fallthru
      _
    %v106 = vld [vmem:[%s4] sm:$0x1]
    %v107 = vld [vmem:[#allocation7] sm:$0xff]
    %v108 = vld [vmem:[#allocation7 + $0x8] sm:$0xff]
    %vm109 = vcmask 130048
    %v111 = vsel %vm109, %v106, 0
    %113 = vmatpush.msra.mxu0 0.0
    %114 = vmatpush.msra.mxu0 0.0
    %115 = vmatpush.msra.mxu0 0.0
    %116 = vmatpush.msra.mxu0 0.0
    %117 = vmatpush.msra.mxu0 0.0
    %118 = vmatpush.msra.mxu0 0.0
    %119 = vmatpush.msra.mxu0 0.0
    %120 = vmatpush.msra.mxu0 0.0
    %121 = vmatpush.msra.mxu0 0.0
    %122 = vmatpush.msra.mxu0 0.0
    %123 = vmatpush.msra.mxu0 0.0
    %124 = vmatpush.msra.mxu0 0.0
    %125 = vmatpush.msra.mxu0 0.0
    %126 = vmatpush.msra.mxu0 0.0
    %127 = vmatpush.msra.mxu0 %v108
    %128 = vmatpush.msra.mxu0 %v107
    %129 = vmatmul.f32.gmra.mxu0 %v111
    %v130 = vpop.f32.mrf.mxu0
    %v131 = vadd.f32 0.0, %v130
    %132 = vdwg.mxu0
    %v133 = vld [vmem:[#allocation2] sm:$0x1]
    %v134 = vld [vmem:[#allocation4] sm:$0xff]
    %v135 = vld [vmem:[#allocation4 + $0x8] sm:$0xff]
    %v136 = vld [vmem:[#allocation4 + $0x10] sm:$0xff]
    %v137 = vld [vmem:[#allocation4 + $0x18] sm:$0xff]
    %v138 = vunpack.c.0.s8 %v134
    %v139 = vunpack.c.1.s8 %v134
    %v140 = vunpack.c.2.s8 %v134
    %v141 = vunpack.c.3.s8 %v134
    %v142 = vunpack.c.0.s8 %v135
    %v143 = vunpack.c.1.s8 %v135
    %v144 = vunpack.c.2.s8 %v135
    %v145 = vunpack.c.3.s8 %v135
    %v146 = vunpack.c.0.s8 %v136
    %v147 = vunpack.c.1.s8 %v136
    %v148 = vunpack.c.2.s8 %v136
    %v149 = vunpack.c.3.s8 %v136
    %v150 = vunpack.c.0.s8 %v137
    %v151 = vunpack.c.1.s8 %v137
    %v152 = vunpack.c.2.s8 %v137
    %v153 = vunpack.c.3.s8 %v137
    %v154 = vcvt.s32.f32 %v138
    %v155 = vcvt.s32.f32 %v139
    %v156 = vcvt.s32.f32 %v140
    %v157 = vcvt.s32.f32 %v141
    %v158 = vcvt.s32.f32 %v142
    %v159 = vcvt.s32.f32 %v143
    %v160 = vcvt.s32.f32 %v144
    %v161 = vcvt.s32.f32 %v145
    %v162 = vcvt.s32.f32 %v146
    %v163 = vcvt.s32.f32 %v147
    %v164 = vcvt.s32.f32 %v148
    %v165 = vcvt.s32.f32 %v149
    %v166 = vcvt.s32.f32 %v150
    %v167 = vcvt.s32.f32 %v151
    %v168 = vcvt.s32.f32 %v152
    %v169 = vcvt.s32.f32 %v153
    %170 = vmatpush.msra.mxu0 %v169
    %171 = vmatpush.msra.mxu0 %v168
    %172 = vmatpush.msra.mxu0 %v167
    %173 = vmatpush.msra.mxu0 %v166
    %174 = vmatpush.msra.mxu0 %v165
    %175 = vmatpush.msra.mxu0 %v164
    %176 = vmatpush.msra.mxu0 %v163
    %177 = vmatpush.msra.mxu0 %v162
    %178 = vmatpush.msra.mxu0 %v161
    %179 = vmatpush.msra.mxu0 %v160
    %180 = vmatpush.msra.mxu0 %v159
    %181 = vmatpush.msra.mxu0 %v158
    %182 = vmatpush.msra.mxu0 %v157
    %183 = vmatpush.msra.mxu0 %v156
    %184 = vmatpush.msra.mxu0 %v155
    %185 = vmatpush.msra.mxu0 %v154
    %186 = vmatmul.f32.gmra.mxu0 %v131
    %v187 = vpop.f32.mrf.mxu0
    %v188 = vadd.f32 0.0, %v187
    %189 = vdwg.mxu0
    %v190 = vadd.f32 %v133, %v188
    %191 = vst [vmem:[#allocation2] sm:$0x1] %v190
    // Predicated region
    $region42: #{tpu_custom_call.1} parent=1 // pred_check
      %p192 = pneg %p72
    $region43: #{tpu_custom_call.1} parent=1 // pred_check_branch
      %194 = sbr.rel (%p192) target = $region45
    $region44: #{tpu_custom_call.1} parent=1 // pred_region
      %v195 = vld [vmem:[#allocation2] sm:$0x1]
      %196 = vst [vmem:[#allocation10] sm:$0x1] %v195
    $region45: #{tpu_custom_call.1} parent=1 // pred_fallthru
      _
    // Predicated region
    $region46: #{tpu_custom_call.1} parent=1 // pred_check
      _
    $region47: #{tpu_custom_call.1} parent=1 // pred_check_branch
      %198 = sbr.rel (0) target = $region49
    $region48: #{tpu_custom_call.1} parent=1 // pred_region
      %200 = vsyncadd [#allocation6], 0
      %s202 = sshll.u32 [#allocation10], 4
      %s203 = int_to_ptr.vmem [resolvable:$true] %s202
      %s204 = sshll.u32 %s6, 4
      %s205 = int_to_ptr.hbm [resolvable:$true] %s204
      %207 = dma.vmem_to_hbm [thread:$0]  %s203, 16, %s205, [#allocation6]
    $region49: #{tpu_custom_call.1} parent=1 // pred_fallthru
      _
    // Predicated region
    $region50: #{tpu_custom_call.1} parent=1 // pred_check
      _
    $region51: #{tpu_custom_call.1} parent=1 // pred_check_branch
      %209 = sbr.rel (0) target = $region53
    $region52: #{tpu_custom_call.1} parent=1 // pred_region
      %211 = dma.done [#allocation6], 16
    $region53: #{tpu_custom_call.1} parent=1 // pred_fallthru
      _
    %212 = vsyncpa [#allocation5], 1
    %213 = vsyncpa [#allocation8], 1
    %214 = vsyncpa [#allocation6], 1

</llo_original>
